<compile_context>
chip_gen: v7x
topology: tpu7x:2x2x1
jax: 0.10.0
libtpu: 0.0.40
codegen_flags: <defaults>
</compile_context>

<pallas_src>
import jax
import jax.numpy as jnp
from jax.experimental import pallas as pl
from jax.experimental.pallas import tpu as pltpu

LANES = 128   # lane width of a vreg
SUBLANES = 8  # sublane height of a f32 vreg


def quantum_encoder_kernel(x0_ref, x1_ref, out_ref):
    # x0_ref, x1_ref, out_ref : VMEM f32[block_rows, 128]  (lane-dense slabs)
    # <Z> after RX(x0) -> RY(x1) -> RZ(p) on |0> is exactly cos(x0)*cos(x1);
    # the RZ phase cancels in the measurement, so no params are needed here.
    out_ref[...] = jnp.cos(x0_ref[...]) * jnp.cos(x1_ref[...])


def quantum_encoder_forward(params, x, *, block_rows=512):
    """Forward pass of QuantumEncoder.

    params: f32[n_qubits*3] -- accepted for API parity with the PyTorch module;
            unused because the RZ(params[2]) gate commutes with the PauliZ
            measurement and cancels exactly in <Z>.
    x:      f32[F] (single sample, like the PyTorch forward) or f32[B, F].
    Returns: scalar <Z> for a 1-D input, or f32[B, 1] for a batched input.
    """
    del params  # RZ angle cancels in <Z> (see kernel comment).

    squeeze = x.ndim == 1
    if squeeze:
        x = x[None, :]
    B, F = x.shape
    if F < 2:
        raise ValueError(f"QuantumEncoder needs n_features >= 2, got {F}")

    # Only the first two feature columns are ever read -> slice before the
    # pallas_call so unused columns are never DMA'd.
    x0 = x[:, 0].astype(jnp.float32)
    x1 = x[:, 1].astype(jnp.float32)

    # Lane-dense slab layout: batch on lanes, rows on sublanes.
    rows = pl.cdiv(B, LANES)
    rows_rounded = ((rows + SUBLANES - 1) // SUBLANES) * SUBLANES
    block_rows = max(SUBLANES, min(int(block_rows), rows_rounded))
    block_rows = ((block_rows + SUBLANES - 1) // SUBLANES) * SUBLANES
    rows_pad = ((rows_rounded + block_rows - 1) // block_rows) * block_rows
    b_pad = rows_pad * LANES

    def to_slab(v):
        v = jnp.pad(v, (0, b_pad - B))
        return v.reshape(rows_pad, LANES)

    x0s = to_slab(x0)
    x1s = to_slab(x1)

    grid = (rows_pad // block_rows,)
    blk = pl.BlockSpec((block_rows, LANES), lambda i: (i, 0))

    out_slab = pl.pallas_call(
        quantum_encoder_kernel,
        out_shape=jax.ShapeDtypeStruct((rows_pad, LANES), jnp.float32),
        grid_spec=pltpu.PrefetchScalarGridSpec(
            num_scalar_prefetch=0,
            grid=grid,
            in_specs=[blk, blk],
            out_specs=blk,
        ),
        compiler_params=pltpu.CompilerParams(
            dimension_semantics=("parallel",),
        ),
    )(x0s, x1s)

    out = out_slab.reshape(-1)[:B]   # drop pad rows (pad values never returned)
    if squeeze:
        return out[0]
    return out[:, None]


if __name__ == "__main__":
    key = jax.random.PRNGKey(0)
    k_params, k_x, k_big = jax.random.split(key, 3)

    n_qubits = 1
    n_features = 4
    batch = 8

    # Deterministic stand-in for torch.randn(n_qubits * 3) drawn in forward().
    params = jax.random.normal(k_params, (n_qubits * 3,), dtype=jnp.float32)
    x = jax.random.normal(k_x, (batch, n_features), dtype=jnp.float32)

    out = jax.block_until_ready(quantum_encoder_forward(params, x))
    ref = (jnp.cos(x[:, 0]) * jnp.cos(x[:, 1]))[:, None]
    assert out.shape == (batch, 1)
    assert jnp.allclose(out, ref, atol=1e-5), (out, ref)

    # Single-sample path (matches the PyTorch forward signature exactly).
    out1 = jax.block_until_ready(quantum_encoder_forward(params, x[0]))
    assert jnp.allclose(out1, jnp.cos(x[0, 0]) * jnp.cos(x[0, 1]), atol=1e-5)

    # Larger ragged batch: exercises lane padding + the multi-step parallel grid.
    B2 = 1500
    x_big = jax.random.normal(k_big, (B2, n_features), dtype=jnp.float32)
    out_big = jax.block_until_ready(
        quantum_encoder_forward(params, x_big, block_rows=8))
    ref_big = (jnp.cos(x_big[:, 0]) * jnp.cos(x_big[:, 1]))[:, None]
    assert out_big.shape == (B2, 1)
    assert jnp.allclose(out_big, ref_big, atol=1e-5)

    print("KERNEL_OK")
</pallas_src>

<mosaic_0001>
module attributes {stable_mosaic.version = 11 : i64} {
  func.func @quantum_encoder_kernel(%arg0: i32, %arg1: memref<8x128xf32, #tpu.memory_space<vmem>>, %arg2: memref<8x128xf32, #tpu.memory_space<vmem>>, %arg3: memref<8x128xf32, #tpu.memory_space<vmem>>) attributes {dimension_semantics = [#tpu.dimension_semantics<parallel>], iteration_bounds = array<i64: 1>, scalar_prefetch = 0 : i64, scratch_operands = 0 : i64, tpu.core_type = #tpu.core_type<tc>, window_params = [{transform_indices = @transform_0, window_bounds = array<i64: 8, 128>}, {transform_indices = @transform_1, window_bounds = array<i64: 8, 128>}, {transform_indices = @transform_2, window_bounds = array<i64: 8, 128>}]} {
    %c0 = arith.constant 0 : index
    %c0_0 = arith.constant 0 : index
    %0 = vector.load %arg1[%c0, %c0_0] : memref<8x128xf32, #tpu.memory_space<vmem>>, vector<8x128xf32>
    %1 = math.cos %0 : vector<8x128xf32>
    %c0_1 = arith.constant 0 : index
    %c0_2 = arith.constant 0 : index
    %2 = vector.load %arg2[%c0_1, %c0_2] : memref<8x128xf32, #tpu.memory_space<vmem>>, vector<8x128xf32>
    %3 = math.cos %2 : vector<8x128xf32>
    %4 = arith.mulf %1, %3 : vector<8x128xf32>
    %c0_3 = arith.constant 0 : index
    %c0_4 = arith.constant 0 : index
    %5 = vector.load %arg3[%c0_3, %c0_4] : memref<8x128xf32, #tpu.memory_space<vmem>>, vector<8x128xf32>
    tpu.vector_store %arg3[%c0_3, %c0_4], %4 {strides = array<i32>} : memref<8x128xf32, #tpu.memory_space<vmem>>, vector<8x128xf32>,
    return
  }
  func.func @transform_0(%arg0: i32) -> (i32, i32) {
    %c0_i32 = arith.constant 0 : i32
    %c0_i32_0 = arith.constant 0 : i32
    return %arg0, %c0_i32 : i32, i32
  }
  func.func @transform_1(%arg0: i32) -> (i32, i32) {
    %c0_i32 = arith.constant 0 : i32
    %c0_i32_0 = arith.constant 0 : i32
    return %arg0, %c0_i32 : i32, i32
  }
  func.func @transform_2(%arg0: i32) -> (i32, i32) {
    %c0_i32 = arith.constant 0 : i32
    %c0_i32_0 = arith.constant 0 : i32
    return %arg0, %c0_i32 : i32, i32
  }
}

</mosaic_0001>

<llo_original>
// kernel: tpu_custom_call.1
$region0: #{tpu_custom_call.1}
  #allocation0 [shape = 'u32[]', space=smem, size = 0x4, offset = 0x4, fixed_abs, tag = 'smem constant byte address 0x4 - core index']
  #allocation1 [shape = 'u32[144,128]{1,0:T(1,128)}', space=vmem, size = 0x12000, scoped, tag = 'internal scratch']
  %s0 = inlined_call_operand.hbm [shape: f32[8,128], index: 0, kind: input, shape index: {}]
  %s1 = inlined_call_operand.hbm [shape: f32[8,128], index: 1, kind: input, shape index: {}]
  %s2 = inlined_call_operand.hbm [shape: f32[8,128], index: 2, kind: output, shape index: {}]
  %s3 = sld [smem:[#allocation0]]
  $region26: #{tpu_custom_call.1} parent=0
    _
  %s5 = ssub.s32 1, %s3
  %s6 = scalar_select 0, %s5, %s3
  $region1: #{tpu_custom_call.1} parent=0
    #allocation2 [shape = 'u8[4096]{0}', space=vmem, size = 0x1000, scoped, tag = 'input window, operand 0, single buffered']
    #allocation3 [shape = 's32[1]{0}', space=sflag, size = 0x4, scoped, tag = 'scoped memory for tpu_custom_call.1']
    #allocation4 [shape = 's32[1]{0}', space=sflag, size = 0x4, scoped, tag = 'scoped memory for tpu_custom_call.1']
    #allocation5 [shape = 'u8[4096]{0}', space=vmem, size = 0x1000, scoped, tag = 'input window, operand 1, single buffered']
    #allocation6 [shape = 's32[1]{0}', space=sflag, size = 0x4, scoped, tag = 'scoped memory for tpu_custom_call.1']
    #allocation7 [shape = 'u8[4096]{0}', space=vmem, size = 0x1000, scoped, tag = 'output window, operand 0, single buffered']
    %7 = vsyncpa [#allocation3], 0
    %8 = vsyncpa [#allocation6], 0
    %9 = vsyncpa [#allocation4], 0
    // Predicated region
    $region2: #{tpu_custom_call.1} parent=1 // pred_check
      _
    $region3: #{tpu_custom_call.1} parent=1 // pred_check_branch
      %11 = sbr.rel (0) target = $region5
    $region4: #{tpu_custom_call.1} parent=1 // pred_region
      %s13 = ssub.s32 128, 128
      %14 = vsyncadd [#allocation3], %s13
      %s16 = sshll.u32 [#allocation2], 4
      %s17 = int_to_ptr.vmem [resolvable:$true] %s16
      %19 = dma.hbm_to_vmem [thread:$0]  %s0, 128, %s17, [#allocation3]
    $region5: #{tpu_custom_call.1} parent=1 // pred_fallthru
      _
    // Predicated region
    $region6: #{tpu_custom_call.1} parent=1 // pred_check
      _
    $region7: #{tpu_custom_call.1} parent=1 // pred_check_branch
      %21 = sbr.rel (0) target = $region9
    $region8: #{tpu_custom_call.1} parent=1 // pred_region
      %s23 = ssub.s32 128, 128
      %24 = vsyncadd [#allocation6], %s23
      %s26 = sshll.u32 [#allocation5], 4
      %s27 = int_to_ptr.vmem [resolvable:$true] %s26
      %29 = dma.hbm_to_vmem [thread:$0]  %s1, 128, %s27, [#allocation6]
    $region9: #{tpu_custom_call.1} parent=1 // pred_fallthru
      _
    // Predicated region
    $region10: #{tpu_custom_call.1} parent=1 // pred_check
      _
    $region11: #{tpu_custom_call.1} parent=1 // pred_check_branch
      %31 = sbr.rel (0) target = $region13
    $region12: #{tpu_custom_call.1} parent=1 // pred_region
      %32 = dma.done [#allocation3], 128
    $region13: #{tpu_custom_call.1} parent=1 // pred_fallthru
      _
    // Predicated region
    $region14: #{tpu_custom_call.1} parent=1 // pred_check
      _
    $region15: #{tpu_custom_call.1} parent=1 // pred_check_branch
      %34 = sbr.rel (0) target = $region17
    $region16: #{tpu_custom_call.1} parent=1 // pred_region
      %35 = dma.done [#allocation6], 128
    $region17: #{tpu_custom_call.1} parent=1 // pred_fallthru
      _
    %v36 = vld [vmem:[#allocation2] sm:$0xff]
    %v37 = vand.u32 2147483647, %v36
    %vm38 = vcmp.le.f32.partialorder %v37, 0.7853982
    %vm39 = vcmp.lt.s32.totalorder %v36, 0
    %v40 = vand.u32 %v36, 2139095040
    %v41 = vshrl.u32 %v40, 23
    %v42 = vsub.s32 %v41, 127
    %v43 = vand.u32 2147483647, %v36
    %v44 = vand.u32 %v43, 8388607
    %v45 = vor.u32 %v44, 8388608
    %v46 = vsub.s32 0, %v45
    %v47 = vadd.s32 %v42, 1
    %vm48 = vcmp.gt.s32.totalorder %v47, 0
    %v49 = vsel %vm48, %v47, 0
    %v50 = vshrl.u32 %v49, 5
    %v51 = vand.u32 %v49, 31
    %v52 = vsub.s32 32, %v51
    %v53 = vshrl.u32 683565275, %v52
    %v54 = vshll.u32 683565275, %v51
    %v55 = vshrl.u32 2475754826, %v52
    %v56 = vor.u32 %v54, %v55
    %v57 = vshll.u32 2475754826, %v51
    %v58 = vshrl.u32 2131351028, %v52
    %v59 = vor.u32 %v57, %v58
    %v60 = vshll.u32 2131351028, %v51
    %v61 = vshrl.u32 2102212464, %v52
    %v62 = vor.u32 %v60, %v61
    %v63 = vshll.u32 2102212464, %v51
    %v64 = vshrl.u32 920167782, %v52
    %v65 = vor.u32 %v63, %v64
    %v66 = vshll.u32 920167782, %v51
    %v67 = vshrl.u32 1326507024, %v52
    %v68 = vor.u32 %v66, %v67
    %vm69 = vcmp.lt.s32.totalorder %v50, 1
    %vm70 = vcmp.lt.s32.totalorder %v50, 2
    %vm71 = vcmp.lt.s32.totalorder %v50, 3
    %vm72 = vcmp.lt.s32.totalorder %v50, 4
    %v73 = vsel %vm69, %v53, %v56
    %v74 = vsel %vm72, %v62, 2102212464
    %v75 = vsel %vm71, %v59, %v74
    %v76 = vsel %vm70, %v73, %v75
    %v77 = vsel %vm69, %v56, %v59
    %v78 = vsel %vm72, %v65, 920167782
    %v79 = vsel %vm71, %v62, %v78
    %v80 = vsel %vm70, %v77, %v79
    %v81 = vsel %vm69, %v59, %v62
    %v82 = vsel %vm72, %v68, 1326507024
    %v83 = vsel %vm71, %v65, %v82
    %v84 = vsel %vm70, %v81, %v83
    %v85 = vshll.u32 %v45, 8
    %v86 = vmul.u32.u64.compose %v85, %v84
    %v87 = vextract.low.u32 %v86
    %v88 = vextract.high.u32 %v86
    %v89 = vmul.u32.u64.compose %v85, %v80
    %v90 = vextract.low.u32 %v89
    %v91 = vextract.high.u32 %v89
    %v92 = vmul.u32 %v85, %v76
    %v93 = vadd.s32 %v88, %v90
    %vm94 = vc.u32 %v88, %v90
    %v95 = vadd.s32 %v91, 1
    %v96 = vsel %vm94, %v95, %v91
    %v97 = vadd.s32 %v92, %v96
    %v98 = vadd.s32 %v97, 536870912
    %v99 = vshrl.u32 %v98, 30
    %v100 = vshll.u32 %v99, 30
    %v101 = vsub.s32 %v97, %v100
    %vm102 = vcmp.lt.s32.totalorder %v101, 0
    %v103 = vsub.s32 0, %v101
    %v104 = vsel %vm102, %v103, %v101
    %v105 = vclz %v104
    %v106 = vsub.s32 %v105, 2
    %vm107 = vcmp.gt.s32.totalorder 0, %v106
    %v108 = vsel %vm107, 0, %v106
    %v109 = vsub.s32 32, %v108
    %v110 = vshll.u32 %v101, %v108
    %v111 = vshrl.u32 %v93, %v109
    %v112 = vor.u32 %v110, %v111
    %v113 = vsub.s32 4294967266, %v108
    %v114 = vadd.s32 %v113, 127
    %v115 = vshll.u32 %v114, 23
    %v116 = vor.u32 4788187, %v115
    %v117 = vand.u32 2147483647, %v116
    %v119 = vcvt.s32.f32 %v112
    %v120 = vmul.f32 %v119, %v117
    %v121 = vxor.u32 %v120, 2147483648
    %v122 = vsel %vm39, %v121, %v120
    %v123 = vsub.s32 4, %v99
    %v124 = vsel %vm39, %v123, %v99
    %v125 = vsel %vm38, %v36, %v122
    %v126 = vsel %vm38, 0, %v124
    %v127 = vcosq.f32.pop %v125
    %v128 = vsinq.f32.pop %v125
    %vm129 = vweird.f32 %v36
    %v130 = vand.u32 %v126, 3
    %vm131 = vcmp.lt.s32.totalorder %v130, 2
    %vm132 = vcmp.eq.s32.totalorder %v130, 0
    %v133 = vxor.u32 %v128, 2147483648
    %v134 = vsel %vm132, %v127, %v133
    %vm135 = vcmp.eq.s32.totalorder %v130, 2
    %v136 = vxor.u32 %v127, 2147483648
    %v137 = vsel %vm135, %v136, %v128
    %v138 = vsel %vm131, %v134, %v137
    %v139 = vsel %vm129, nan, %v138
    %v140 = vld [vmem:[#allocation5] sm:$0xff]
    %v141 = vand.u32 2147483647, %v140
    %vm142 = vcmp.le.f32.partialorder %v141, 0.7853982
    %vm143 = vcmp.lt.s32.totalorder %v140, 0
    %v144 = vand.u32 %v140, 2139095040
    %v145 = vshrl.u32 %v144, 23
    %v146 = vsub.s32 %v145, 127
    %v147 = vand.u32 2147483647, %v140
    %v148 = vand.u32 %v147, 8388607
    %v149 = vor.u32 %v148, 8388608
    %v150 = vsub.s32 0, %v149
    %v151 = vadd.s32 %v146, 1
    %vm152 = vcmp.gt.s32.totalorder %v151, 0
    %v153 = vsel %vm152, %v151, 0
    %v154 = vshrl.u32 %v153, 5
    %v155 = vand.u32 %v153, 31
    %v156 = vsub.s32 32, %v155
    %v157 = vshrl.u32 683565275, %v156
    %v158 = vshll.u32 683565275, %v155
    %v159 = vshrl.u32 2475754826, %v156
    %v160 = vor.u32 %v158, %v159
    %v161 = vshll.u32 2475754826, %v155
    %v162 = vshrl.u32 2131351028, %v156
    %v163 = vor.u32 %v161, %v162
    %v164 = vshll.u32 2131351028, %v155
    %v165 = vshrl.u32 2102212464, %v156
    %v166 = vor.u32 %v164, %v165
    %v167 = vshll.u32 2102212464, %v155
    %v168 = vshrl.u32 920167782, %v156
    %v169 = vor.u32 %v167, %v168
    %v170 = vshll.u32 920167782, %v155
    %v171 = vshrl.u32 1326507024, %v156
    %v172 = vor.u32 %v170, %v171
    %vm173 = vcmp.lt.s32.totalorder %v154, 1
    %vm174 = vcmp.lt.s32.totalorder %v154, 2
    %vm175 = vcmp.lt.s32.totalorder %v154, 3
    %vm176 = vcmp.lt.s32.totalorder %v154, 4
    %v177 = vsel %vm173, %v157, %v160
    %v178 = vsel %vm176, %v166, 2102212464
    %v179 = vsel %vm175, %v163, %v178
    %v180 = vsel %vm174, %v177, %v179
    %v181 = vsel %vm173, %v160, %v163
    %v182 = vsel %vm176, %v169, 920167782
    %v183 = vsel %vm175, %v166, %v182
    %v184 = vsel %vm174, %v181, %v183
    %v185 = vsel %vm173, %v163, %v166
    %v186 = vsel %vm176, %v172, 1326507024
    %v187 = vsel %vm175, %v169, %v186
    %v188 = vsel %vm174, %v185, %v187
    %v189 = vshll.u32 %v149, 8
    %v190 = vmul.u32.u64.compose %v189, %v188
    %v191 = vextract.low.u32 %v190
    %v192 = vextract.high.u32 %v190
    %v193 = vmul.u32.u64.compose %v189, %v184
    %v194 = vextract.low.u32 %v193
    %v195 = vextract.high.u32 %v193
    %v196 = vmul.u32 %v189, %v180
    %v197 = vadd.s32 %v192, %v194
    %vm198 = vc.u32 %v192, %v194
    %v199 = vadd.s32 %v195, 1
    %v200 = vsel %vm198, %v199, %v195
    %v201 = vadd.s32 %v196, %v200
    %v202 = vadd.s32 %v201, 536870912
    %v203 = vshrl.u32 %v202, 30
    %v204 = vshll.u32 %v203, 30
    %v205 = vsub.s32 %v201, %v204
    %vm206 = vcmp.lt.s32.totalorder %v205, 0
    %v207 = vsub.s32 0, %v205
    %v208 = vsel %vm206, %v207, %v205
    %v209 = vclz %v208
    %v210 = vsub.s32 %v209, 2
    %vm211 = vcmp.gt.s32.totalorder 0, %v210
    %v212 = vsel %vm211, 0, %v210
    %v213 = vsub.s32 32, %v212
    %v214 = vshll.u32 %v205, %v212
    %v215 = vshrl.u32 %v197, %v213
    %v216 = vor.u32 %v214, %v215
    %v217 = vsub.s32 4294967266, %v212
    %v218 = vadd.s32 %v217, 127
    %v219 = vshll.u32 %v218, 23
    %v220 = vor.u32 4788187, %v219
    %v221 = vand.u32 2147483647, %v220
    %v223 = vcvt.s32.f32 %v216
    %v224 = vmul.f32 %v223, %v221
    %v225 = vxor.u32 %v224, 2147483648
    %v226 = vsel %vm143, %v225, %v224
    %v227 = vsub.s32 4, %v203
    %v228 = vsel %vm143, %v227, %v203
    %v229 = vsel %vm142, %v140, %v226
    %v230 = vsel %vm142, 0, %v228
    %v231 = vcosq.f32.pop %v229
    %v232 = vsinq.f32.pop %v229
    %vm233 = vweird.f32 %v140
    %v234 = vand.u32 %v230, 3
    %vm235 = vcmp.lt.s32.totalorder %v234, 2
    %vm236 = vcmp.eq.s32.totalorder %v234, 0
    %v237 = vxor.u32 %v232, 2147483648
    %v238 = vsel %vm236, %v231, %v237
    %vm239 = vcmp.eq.s32.totalorder %v234, 2
    %v240 = vxor.u32 %v231, 2147483648
    %v241 = vsel %vm239, %v240, %v232
    %v242 = vsel %vm235, %v238, %v241
    %v243 = vsel %vm233, nan, %v242
    %v244 = vmul.f32 %v139, %v243
    %245 = vst [vmem:[#allocation7] sm:$0xff] %v244
    // Predicated region
    $region18: #{tpu_custom_call.1} parent=1 // pred_check
      _
    $region19: #{tpu_custom_call.1} parent=1 // pred_check_branch
      %247 = sbr.rel (0) target = $region21
    $region20: #{tpu_custom_call.1} parent=1 // pred_region
      %s249 = ssub.s32 128, 128
      %250 = vsyncadd [#allocation4], %s249
      %s252 = sshll.u32 [#allocation7], 4
      %s253 = int_to_ptr.vmem [resolvable:$true] %s252
      %255 = dma.vmem_to_hbm [thread:$0]  %s253, 128, %s2, [#allocation4]
    $region21: #{tpu_custom_call.1} parent=1 // pred_fallthru
      _
    // Predicated region
    $region22: #{tpu_custom_call.1} parent=1 // pred_check
      _
    $region23: #{tpu_custom_call.1} parent=1 // pred_check_branch
      %257 = sbr.rel (0) target = $region25
    $region24: #{tpu_custom_call.1} parent=1 // pred_region
      %258 = dma.done [#allocation4], 128
    $region25: #{tpu_custom_call.1} parent=1 // pred_fallthru
      _
    %259 = vsyncpa [#allocation3], 1
    %260 = vsyncpa [#allocation6], 1
    %261 = vsyncpa [#allocation4], 1

</llo_original>
